<compile_context>
chip_gen: v6e
topology: v6e:2x2x1
jax: 0.10.0
libtpu: 0.0.40
codegen_flags: <defaults>
</compile_context>

<pallas_src>
import jax
import jax.numpy as jnp
from jax import lax
from jax.experimental import pallas as pl
from jax.experimental.pallas import tpu as pltpu


def qnet_kernel(state_ref, action_ref, w1s_ref, w1a_ref, b1_ref,
                w2_ref, b2_ref, w3_ref, b3_ref, o_ref):
    # state: (bt, S) bf16   action: (bt, A) bf16
    # w1s: (S, H) bf16  w1a: (A, H) bf16  b1: (1, H) f32
    # w2:  (H, H) bf16  b2:  (1, H) f32
    # w3:  (1, H) f32 (row)   b3: (1, 1) f32 scalar in SMEM
    # o:   (1, bt) f32  (lane-dense Q-value row; bt % 128 == 0)

    # Layer 1 — concat fused into two MXU matmuls, f32 accumulation.
    h1 = (jnp.dot(state_ref[...], w1s_ref[...], preferred_element_type=jnp.float32)
          + jnp.dot(action_ref[...], w1a_ref[...], preferred_element_type=jnp.float32)
          + b1_ref[...])
    h1 = jnp.maximum(h1, 0.0).astype(jnp.bfloat16)

    # Layer 2 — H x H MXU matmul, f32 accumulation.
    h2 = jnp.dot(h1, w2_ref[...], preferred_element_type=jnp.float32) + b2_ref[...]
    h2 = jnp.maximum(h2, 0.0)

    # Layer 3 — (H -> 1) on the VPU: per-row dot with w3 (lane reduction).
    q_col = jnp.sum(h2 * w3_ref[...], axis=-1, keepdims=True) + b3_ref[0, 0]  # (bt, 1)

    # Relayout the per-row scalars (sublane-major column) into a lane-dense
    # (1, bt) row, 128 rows at a time, using only ops guaranteed to lower:
    # broadcasted_iota, where-with-broadcast, sublane-axis sum, static stores.
    bt = q_col.shape[0]
    eye = (lax.broadcasted_iota(jnp.int32, (128, 128), 0)
           == lax.broadcasted_iota(jnp.int32, (128, 128), 1))
    for c in range(bt // 128):
        qc = q_col[c * 128:(c + 1) * 128, :]                          # (128, 1)
        row = jnp.sum(jnp.where(eye, qc, 0.0), axis=0, keepdims=True)  # (1, 128)
        o_ref[:, c * 128:(c + 1) * 128] = row.astype(o_ref.dtype)


def _round_up(x, m):
    return ((x + m - 1) // m) * m


def _choose_tile(B, b_tile):
    """Pick (bt, B_pad): bt multiple of 128 (lane-dense output blocks + bf16
    sublane packing), >= 2 (even) grid steps once the batch is big enough so
    both v7x TensorCores get work, padding bounded to < 1 tile."""
    b_tile = max(128, (int(b_tile) // 128) * 128)
    n_steps = max(1, -(-B // b_tile))
    if B >= 256:
        n_steps = max(2, n_steps)
        if n_steps % 2:               # even split: no straggler TensorCore
            n_steps += 1
    bt = _round_up(-(-B // n_steps), 128)
    B_pad = _round_up(B, bt)
    return bt, B_pad


def qnetwork_forward(state, action, params, *, b_tile=2048):
    """Pallas implementation of QNetwork.forward(state, action) -> (B, 1) f32."""
    w1_s, w1_a, b1, w2, b2, w3_row, b3 = params
    B, S = state.shape
    A = action.shape[1]
    H = w2.shape[0]

    bt, B_pad = _choose_tile(B, b_tile)
    assert bt % 128 == 0 and B_pad % bt == 0

    if B_pad != B:
        pad = B_pad - B
        state = jnp.pad(state, ((0, pad), (0, 0)))
        action = jnp.pad(action, ((0, pad), (0, 0)))

    state = state.astype(jnp.bfloat16)
    action = action.astype(jnp.bfloat16)

    grid = (B_pad // bt,)

    flops = 2 * B_pad * ((S + A) * H + H * H + H)
    bytes_accessed = (B_pad * ((S + A) * 2 + 4)            # activations + output
                      + (S + A) * H * 2 + H * H * 2        # bf16 matmul weights
                      + (3 * H + 1) * 4)                    # f32 biases + w3 row

    out = pl.pallas_call(
        qnet_kernel,
        out_shape=jax.ShapeDtypeStruct((1, B_pad), jnp.float32),
        grid=grid,
        in_specs=[
            # Batch-tiled activation streams (double-buffered by BlockSpec).
            pl.BlockSpec((bt, S), lambda i: (i, 0)),
            pl.BlockSpec((bt, A), lambda i: (i, 0)),
            # Weights / biases: constant index_map -> resident across grid steps.
            pl.BlockSpec((S, H), lambda i: (0, 0)),
            pl.BlockSpec((A, H), lambda i: (0, 0)),
            pl.BlockSpec((1, H), lambda i: (0, 0)),
            pl.BlockSpec((H, H), lambda i: (0, 0)),
            pl.BlockSpec((1, H), lambda i: (0, 0)),
            pl.BlockSpec((1, H), lambda i: (0, 0)),
            # b3: scalar, lives in SMEM (no (1,1) VMEM tile padded to a vreg).
            pl.BlockSpec((1, 1), lambda i: (0, 0),
                         memory_space=pltpu.MemorySpace.SMEM),
        ],
        # Lane-dense output: (1, bt) blocks of a (1, B_pad) row.
        out_specs=pl.BlockSpec((1, bt), lambda i: (0, i)),
        compiler_params=pltpu.CompilerParams(
            dimension_semantics=("parallel",)),
        cost_estimate=pl.CostEstimate(flops=flops, transcendentals=0,
                                      bytes_accessed=bytes_accessed),
    )(state, action, w1_s, w1_a, b1, w2, b2, w3_row, b3)

    # (1, B_pad) -> (B_pad, 1) is a free contiguous reshape; drop padded rows.
    return out.reshape(B_pad, 1)[:B]


def init_params(key, state_size, action_size, hidden_size=128):
    """Deterministic init mimicking nn.Linear default (uniform +/- 1/sqrt(fan_in)).

    Layout for the kernel:
      w1 is pre-split into w1_s (S, H) and w1_a (A, H) (concat fusion),
      matmul weights stored in bf16, biases in f32,
      w3 stored as a (1, H) f32 row (VPU reduce), b3 as a (1, 1) f32 scalar.
    """
    ks = jax.random.split(key, 6)

    def linear(kw, kb, fan_in, fan_out):
        bound = 1.0 / jnp.sqrt(jnp.float32(fan_in))
        w = jax.random.uniform(kw, (fan_in, fan_out), jnp.float32, -bound, bound)
        b = jax.random.uniform(kb, (1, fan_out), jnp.float32, -bound, bound)
        return w, b

    in_dim = state_size + action_size
    w1, b1 = linear(ks[0], ks[1], in_dim, hidden_size)
    w2, b2 = linear(ks[2], ks[3], hidden_size, hidden_size)
    w3, b3 = linear(ks[4], ks[5], hidden_size, 1)

    w1_s = w1[:state_size].astype(jnp.bfloat16)
    w1_a = w1[state_size:].astype(jnp.bfloat16)
    w2_bf = w2.astype(jnp.bfloat16)
    w3_row = w3.T             # (1, H) f32
    b3_sc = b3.reshape(1, 1)  # (1, 1) f32
    return (w1_s, w1_a, b1, w2_bf, b2, w3_row, b3_sc)


def qnetwork_ref(state, action, params):
    """Pure-JAX f32 reference (same stored weights, upcast)."""
    w1_s, w1_a, b1, w2, b2, w3_row, b3 = params
    w1 = jnp.concatenate([w1_s.astype(jnp.float32), w1_a.astype(jnp.float32)], axis=0)
    x = jnp.concatenate([state, action], axis=1).astype(jnp.float32)
    h1 = jnp.maximum(x @ w1 + b1, 0.0)
    h2 = jnp.maximum(h1 @ w2.astype(jnp.float32) + b2, 0.0)
    return h2 @ w3_row.T + b3


if __name__ == "__main__":
    key = jax.random.PRNGKey(0)
    k_state, k_action, k_params = jax.random.split(key, 3)

    state_size = 8
    action_size = 4
    hidden_size = 128   # module default; lane-aligned

    params = init_params(k_params, state_size, action_size, hidden_size)

    # Small-batch check (single grid step, single 128-row chunk).
    batch = 16
    state = jax.random.normal(k_state, (batch, state_size), jnp.float32)
    action = jax.random.normal(k_action, (batch, action_size), jnp.float32)
    q = qnetwork_forward(state, action, params)
    jax.block_until_ready(q)
    q_ref = qnetwork_ref(state, action, params)
    assert q.shape == (batch, 1)
    # bf16 activations/weights with f32 accumulation -> loose-ish tolerance.
    assert jnp.allclose(q, q_ref, atol=2e-2, rtol=2e-2), (
        f"max abs err {jnp.max(jnp.abs(q - q_ref))}")

    # Multi-step / multi-chunk check (grid of 2, two 128-row chunks per tile,
    # ragged batch -> exercises padding + slicing).
    batch2 = 384
    state2 = jax.random.normal(jax.random.PRNGKey(1), (batch2, state_size), jnp.float32)
    action2 = jax.random.normal(jax.random.PRNGKey(2), (batch2, action_size), jnp.float32)
    q2 = qnetwork_forward(state2, action2, params)
    jax.block_until_ready(q2)
    q2_ref = qnetwork_ref(state2, action2, params)
    assert q2.shape == (batch2, 1)
    assert jnp.allclose(q2, q2_ref, atol=2e-2, rtol=2e-2), (
        f"max abs err {jnp.max(jnp.abs(q2 - q2_ref))}")

    print("KERNEL_OK")
</pallas_src>

<mosaic_0001>
module attributes {stable_mosaic.version = 11 : i64} {
  func.func @qnet_kernel(%arg0: i32, %arg1: memref<128x8xbf16, #tpu.memory_space<vmem>>, %arg2: memref<128x4xbf16, #tpu.memory_space<vmem>>, %arg3: memref<8x128xbf16, #tpu.memory_space<vmem>>, %arg4: memref<4x128xbf16, #tpu.memory_space<vmem>>, %arg5: memref<1x128xf32, #tpu.memory_space<vmem>>, %arg6: memref<128x128xbf16, #tpu.memory_space<vmem>>, %arg7: memref<1x128xf32, #tpu.memory_space<vmem>>, %arg8: memref<1x128xf32, #tpu.memory_space<vmem>>, %arg9: memref<1x1xf32, #tpu.memory_space<smem>>, %arg10: memref<1x128xf32, #tpu.memory_space<vmem>>) attributes {dimension_semantics = [#tpu.dimension_semantics<parallel>], iteration_bounds = array<i64: 1>, scalar_prefetch = 0 : i64, scratch_operands = 0 : i64, tpu.core_type = #tpu.core_type<tc>, window_params = [{transform_indices = @transform_0, window_bounds = array<i64: 128, 8>}, {transform_indices = @transform_1, window_bounds = array<i64: 128, 4>}, {pipeline_mode = #tpu.pipeline_mode<synchronous>, transform_indices = @transform_2, window_bounds = array<i64: 8, 128>}, {pipeline_mode = #tpu.pipeline_mode<synchronous>, transform_indices = @transform_3, window_bounds = array<i64: 4, 128>}, {pipeline_mode = #tpu.pipeline_mode<synchronous>, transform_indices = @transform_4, window_bounds = array<i64: 1, 128>}, {pipeline_mode = #tpu.pipeline_mode<synchronous>, transform_indices = @transform_5, window_bounds = array<i64: 128, 128>}, {pipeline_mode = #tpu.pipeline_mode<synchronous>, transform_indices = @transform_6, window_bounds = array<i64: 1, 128>}, {pipeline_mode = #tpu.pipeline_mode<synchronous>, transform_indices = @transform_7, window_bounds = array<i64: 1, 128>}, {transform_indices = @transform_8, window_bounds = array<i64: 1, 1>}, {transform_indices = @transform_9, window_bounds = array<i64: 1, 128>}]} {
    %c0 = arith.constant 0 : index
    %c0_0 = arith.constant 0 : index
    %0 = vector.load %arg1[%c0, %c0_0] : memref<128x8xbf16, #tpu.memory_space<vmem>>, vector<128x8xbf16>
    %c0_1 = arith.constant 0 : index
    %c0_2 = arith.constant 0 : index
    %1 = vector.load %arg3[%c0_1, %c0_2] : memref<8x128xbf16, #tpu.memory_space<vmem>>, vector<8x128xbf16>
    %cst = arith.constant dense<0.000000e+00> : vector<128x128xf32>
    %2 = tpu.matmul %0, %1, %cst {dimension_numbers = #tpu.dot_dimension_numbers<[1], [0], [0], [1], [0, 0, 1, 1], [], []>} : vector<128x8xbf16>, vector<8x128xbf16>, vector<128x128xf32> -> vector<128x128xf32>
    %c0_3 = arith.constant 0 : index
    %c0_4 = arith.constant 0 : index
    %3 = vector.load %arg2[%c0_3, %c0_4] : memref<128x4xbf16, #tpu.memory_space<vmem>>, vector<128x4xbf16>
    %c0_5 = arith.constant 0 : index
    %c0_6 = arith.constant 0 : index
    %4 = vector.load %arg4[%c0_5, %c0_6] : memref<4x128xbf16, #tpu.memory_space<vmem>>, vector<4x128xbf16>
    %cst_7 = arith.constant dense<0.000000e+00> : vector<128x128xf32>
    %5 = tpu.matmul %3, %4, %cst_7 {dimension_numbers = #tpu.dot_dimension_numbers<[1], [0], [0], [1], [0, 0, 1, 1], [], []>} : vector<128x4xbf16>, vector<4x128xbf16>, vector<128x128xf32> -> vector<128x128xf32>
    %6 = arith.addf %2, %5 : vector<128x128xf32>
    %c0_8 = arith.constant 0 : index
    %c0_9 = arith.constant 0 : index
    %7 = vector.load %arg5[%c0_8, %c0_9] : memref<1x128xf32, #tpu.memory_space<vmem>>, vector<1x128xf32>
    %8 = vector.broadcast %7 : vector<1x128xf32> to vector<128x128xf32>
    %9 = arith.addf %6, %8 : vector<128x128xf32>
    %cst_10 = arith.constant 0.000000e+00 : f32
    %10 = vector.broadcast %cst_10 : f32 to vector<128x128xf32>
    %11 = arith.maximumf %9, %10 : vector<128x128xf32>
    %12 = arith.truncf %11 : vector<128x128xf32> to vector<128x128xbf16>
    %c0_11 = arith.constant 0 : index
    %c0_12 = arith.constant 0 : index
    %13 = vector.load %arg6[%c0_11, %c0_12] : memref<128x128xbf16, #tpu.memory_space<vmem>>, vector<128x128xbf16>
    %cst_13 = arith.constant dense<0.000000e+00> : vector<128x128xf32>
    %14 = tpu.matmul %12, %13, %cst_13 {dimension_numbers = #tpu.dot_dimension_numbers<[1], [0], [0], [1], [0, 0, 1, 1], [], []>} : vector<128x128xbf16>, vector<128x128xbf16>, vector<128x128xf32> -> vector<128x128xf32>
    %c0_14 = arith.constant 0 : index
    %c0_15 = arith.constant 0 : index
    %15 = vector.load %arg7[%c0_14, %c0_15] : memref<1x128xf32, #tpu.memory_space<vmem>>, vector<1x128xf32>
    %16 = vector.broadcast %15 : vector<1x128xf32> to vector<128x128xf32>
    %17 = arith.addf %14, %16 : vector<128x128xf32>
    %cst_16 = arith.constant 0.000000e+00 : f32
    %18 = vector.broadcast %cst_16 : f32 to vector<128x128xf32>
    %19 = arith.maximumf %17, %18 : vector<128x128xf32>
    %c0_17 = arith.constant 0 : index
    %c0_18 = arith.constant 0 : index
    %20 = vector.load %arg8[%c0_17, %c0_18] : memref<1x128xf32, #tpu.memory_space<vmem>>, vector<1x128xf32>
    %21 = vector.broadcast %20 : vector<1x128xf32> to vector<128x128xf32>
    %22 = arith.mulf %19, %21 : vector<128x128xf32>
    %cst_19 = arith.constant dense<0.000000e+00> : vector<128xf32>
    %23 = vector.multi_reduction <add>, %22, %cst_19 [1] : vector<128x128xf32> to vector<128xf32>
    %24 = vector.shape_cast %23 : vector<128xf32> to vector<128x1xf32>
    %c0_20 = arith.constant 0 : index
    %c0_21 = arith.constant 0 : index
    %25 = memref.load %arg9[%c0_20, %c0_21] : memref<1x1xf32, #tpu.memory_space<smem>>
    %26 = vector.broadcast %25 : f32 to vector<128x1xf32>
    %27 = arith.addf %24, %26 : vector<128x1xf32>
    %28 = tpu.iota {dimensions = array<i32: 0>} : vector<128x128xi32>
    %29 = tpu.iota {dimensions = array<i32: 1>} : vector<128x128xi32>
    %30 = arith.cmpi eq, %28, %29 : vector<128x128xi32>
    %cst_22 = arith.constant 0.000000e+00 : f32
    %31 = vector.shape_cast %27 : vector<128x1xf32> to vector<128x1xf32>
    %32 = vector.broadcast %31 : vector<128x1xf32> to vector<128x128xf32>
    %33 = vector.broadcast %cst_22 : f32 to vector<128x128xf32>
    %34 = arith.select %30, %32, %33 : vector<128x128xi1>, vector<128x128xf32>
    %cst_23 = arith.constant dense<0.000000e+00> : vector<128xf32>
    %35 = vector.multi_reduction <add>, %34, %cst_23 [0] : vector<128x128xf32> to vector<128xf32>
    %36 = vector.shape_cast %35 : vector<128xf32> to vector<1x128xf32>
    %c0_24 = arith.constant 0 : index
    %c0_25 = arith.constant 0 : index
    %37 = vector.load %arg10[%c0_24, %c0_25] : memref<1x128xf32, #tpu.memory_space<vmem>>, vector<1x128xf32>
    tpu.vector_store %arg10[%c0_24, %c0_25], %36 {strides = array<i32>} : memref<1x128xf32, #tpu.memory_space<vmem>>, vector<1x128xf32>,
    return
  }
  func.func @transform_0(%arg0: i32) -> (i32, i32) {
    %c0_i32 = arith.constant 0 : i32
    %c0_i32_0 = arith.constant 0 : i32
    return %arg0, %c0_i32 : i32, i32
  }
  func.func @transform_1(%arg0: i32) -> (i32, i32) {
    %c0_i32 = arith.constant 0 : i32
    %c0_i32_0 = arith.constant 0 : i32
    return %arg0, %c0_i32 : i32, i32
  }
  func.func @transform_2(%arg0: i32) -> (i32, i32) {
    %c0_i32 = arith.constant 0 : i32
    %c0_i32_0 = arith.constant 0 : i32
    %c0_i32_1 = arith.constant 0 : i32
    return %c0_i32, %c0_i32_0 : i32, i32
  }
  func.func @transform_3(%arg0: i32) -> (i32, i32) {
    %c0_i32 = arith.constant 0 : i32
    %c0_i32_0 = arith.constant 0 : i32
    %c0_i32_1 = arith.constant 0 : i32
    return %c0_i32, %c0_i32_0 : i32, i32
  }
  func.func @transform_4(%arg0: i32) -> (i32, i32) {
    %c0_i32 = arith.constant 0 : i32
    %c0_i32_0 = arith.constant 0 : i32
    %c0_i32_1 = arith.constant 0 : i32
    return %c0_i32, %c0_i32_0 : i32, i32
  }
  func.func @transform_5(%arg0: i32) -> (i32, i32) {
    %c0_i32 = arith.constant 0 : i32
    %c0_i32_0 = arith.constant 0 : i32
    %c0_i32_1 = arith.constant 0 : i32
    return %c0_i32, %c0_i32_0 : i32, i32
  }
  func.func @transform_6(%arg0: i32) -> (i32, i32) {
    %c0_i32 = arith.constant 0 : i32
    %c0_i32_0 = arith.constant 0 : i32
    %c0_i32_1 = arith.constant 0 : i32
    return %c0_i32, %c0_i32_0 : i32, i32
  }
  func.func @transform_7(%arg0: i32) -> (i32, i32) {
    %c0_i32 = arith.constant 0 : i32
    %c0_i32_0 = arith.constant 0 : i32
    %c0_i32_1 = arith.constant 0 : i32
    return %c0_i32, %c0_i32_0 : i32, i32
  }
  func.func @transform_8(%arg0: i32) -> (i32, i32) {
    %c0_i32 = arith.constant 0 : i32
    %c0_i32_0 = arith.constant 0 : i32
    %c0_i32_1 = arith.constant 0 : i32
    return %c0_i32, %c0_i32_0 : i32, i32
  }
  func.func @transform_9(%arg0: i32) -> (i32, i32) {
    %c0_i32 = arith.constant 0 : i32
    %c0_i32_0 = arith.constant 0 : i32
    return %c0_i32, %arg0 : i32, i32
  }
}

</mosaic_0001>

<llo_original>
// kernel: tpu_custom_call.1
$region0: #{tpu_custom_call.1}
  #allocation0 [shape = 'u32[]', space=smem, size = 0x4, offset = 0x4, fixed_abs, tag = 'smem constant byte address 0x4 - core index']
  #allocation1 [shape = 'u32[144,128]{1,0:T(1,128)}', space=vmem, size = 0x12000, scoped, tag = 'internal scratch']
  #allocation2 [shape = 'f32[1,1]{1,0:T(1,128)S(6)}', space=smem, size = 0x200, scoped, tag = 'scoped memory for tpu_custom_call.1']
  %s0 = inlined_call_operand.vmem [shape: bf16[128,8], index: 0, kind: input, shape index: {}]
  %s1 = inlined_call_operand.vmem [shape: bf16[128,4], index: 1, kind: input, shape index: {}]
  %s2 = inlined_call_operand.vmem [shape: bf16[8,128], index: 2, kind: input, shape index: {}]
  %s3 = inlined_call_operand.vmem [shape: bf16[4,128], index: 3, kind: input, shape index: {}]
  %s4 = inlined_call_operand.vmem [shape: f32[1,128], index: 4, kind: input, shape index: {}]
  %s5 = inlined_call_operand.vmem [shape: bf16[128,128], index: 5, kind: input, shape index: {}]
  %s6 = inlined_call_operand.vmem [shape: f32[1,128], index: 6, kind: input, shape index: {}]
  %s7 = inlined_call_operand.vmem [shape: f32[1,128], index: 7, kind: input, shape index: {}]
  %s8 = inlined_call_operand.<no memory space> [shape: f32[1,1], index: 8, kind: input, shape index: {}]
  %s9 = inlined_call_operand.hbm [shape: f32[1,128], index: 9, kind: output, shape index: {}]
  %s10 = sld [smem:[#allocation0]]
  $region46: #{tpu_custom_call.1} parent=0
    _
  %s12 = ssub.s32 1, %s10
  %s13 = scalar_select 0, %s12, %s10
  %14 = sst [smem:[#allocation2]] %s8
  $region1: #{tpu_custom_call.1} parent=0
    #allocation3 [shape = 'u8[512]{0}', space=vmem, size = 0x400, scoped, tag = 'output window, operand 0, single buffered']
    #allocation4 [shape = 's32[1]{0}', space=sflag, size = 0x4, scoped, tag = 'scoped memory for tpu_custom_call.1']
    %15 = vsyncpa [#allocation4], 0
    // Predicated region
    $region2: #{tpu_custom_call.1} parent=1 // pred_check
      _
    $region3: #{tpu_custom_call.1} parent=1 // pred_check_branch
      %17 = sbr.rel (0) target = $region5
    $region4: #{tpu_custom_call.1} parent=1 // pred_region
      _
    $region5: #{tpu_custom_call.1} parent=1 // pred_fallthru
      _
    // Predicated region
    $region6: #{tpu_custom_call.1} parent=1 // pred_check
      _
    $region7: #{tpu_custom_call.1} parent=1 // pred_check_branch
      %19 = sbr.rel (0) target = $region9
    $region8: #{tpu_custom_call.1} parent=1 // pred_region
      _
    $region9: #{tpu_custom_call.1} parent=1 // pred_fallthru
      _
    // Predicated region
    $region10: #{tpu_custom_call.1} parent=1 // pred_check
      _
    $region11: #{tpu_custom_call.1} parent=1 // pred_check_branch
      %21 = sbr.rel (0) target = $region13
    $region12: #{tpu_custom_call.1} parent=1 // pred_region
      _
    $region13: #{tpu_custom_call.1} parent=1 // pred_fallthru
      _
    // Predicated region
    $region14: #{tpu_custom_call.1} parent=1 // pred_check
      _
    $region15: #{tpu_custom_call.1} parent=1 // pred_check_branch
      %23 = sbr.rel (0) target = $region17
    $region16: #{tpu_custom_call.1} parent=1 // pred_region
      _
    $region17: #{tpu_custom_call.1} parent=1 // pred_fallthru
      _
    // Predicated region
    $region18: #{tpu_custom_call.1} parent=1 // pred_check
      _
    $region19: #{tpu_custom_call.1} parent=1 // pred_check_branch
      %25 = sbr.rel (0) target = $region21
    $region20: #{tpu_custom_call.1} parent=1 // pred_region
      _
    $region21: #{tpu_custom_call.1} parent=1 // pred_fallthru
      _
    // Predicated region
    $region22: #{tpu_custom_call.1} parent=1 // pred_check
      _
    $region23: #{tpu_custom_call.1} parent=1 // pred_check_branch
      %27 = sbr.rel (0) target = $region25
    $region24: #{tpu_custom_call.1} parent=1 // pred_region
      _
    $region25: #{tpu_custom_call.1} parent=1 // pred_fallthru
      _
    // Predicated region
    $region26: #{tpu_custom_call.1} parent=1 // pred_check
      _
    $region27: #{tpu_custom_call.1} parent=1 // pred_check_branch
      %29 = sbr.rel (0) target = $region29
    $region28: #{tpu_custom_call.1} parent=1 // pred_region
      _
    $region29: #{tpu_custom_call.1} parent=1 // pred_fallthru
      _
    // Predicated region
    $region30: #{tpu_custom_call.1} parent=1 // pred_check
      _
    $region31: #{tpu_custom_call.1} parent=1 // pred_check_branch
      %31 = sbr.rel (0) target = $region33
    $region32: #{tpu_custom_call.1} parent=1 // pred_region
      _
    $region33: #{tpu_custom_call.1} parent=1 // pred_fallthru
      _
    // Predicated region
    $region34: #{tpu_custom_call.1} parent=1 // pred_check
      _
    $region35: #{tpu_custom_call.1} parent=1 // pred_check_branch
      %33 = sbr.rel (0) target = $region37
    $region36: #{tpu_custom_call.1} parent=1 // pred_region
      _
    $region37: #{tpu_custom_call.1} parent=1 // pred_fallthru
      _
    %v35 = vld [vmem:[%s0] sm:$0xf]
    %v36 = vld [vmem:[%s0 + $0x4] sm:$0xf]
    %v37 = vld [vmem:[%s0 + $0x8] sm:$0xf]
    %v38 = vld [vmem:[%s0 + $0xc] sm:$0xf]
    %v39 = vld [vmem:[%s0 + $0x10] sm:$0xf]
    %v40 = vld [vmem:[%s0 + $0x14] sm:$0xf]
    %v41 = vld [vmem:[%s0 + $0x18] sm:$0xf]
    %v42 = vld [vmem:[%s0 + $0x1c] sm:$0xf]
    %v43 = vld [vmem:[%s0 + $0x20] sm:$0xf]
    %v44 = vld [vmem:[%s0 + $0x24] sm:$0xf]
    %v45 = vld [vmem:[%s0 + $0x28] sm:$0xf]
    %v46 = vld [vmem:[%s0 + $0x2c] sm:$0xf]
    %v47 = vld [vmem:[%s0 + $0x30] sm:$0xf]
    %v48 = vld [vmem:[%s0 + $0x34] sm:$0xf]
    %v49 = vld [vmem:[%s0 + $0x38] sm:$0xf]
    %v50 = vld [vmem:[%s0 + $0x3c] sm:$0xf]
    %v51 = vld [vmem:[%s2] sm:$0xf]
    %v52 = vld [vmem:[%s1] sm:$0xf]
    %v53 = vld [vmem:[%s1 + $0x4] sm:$0xf]
    %v54 = vld [vmem:[%s1 + $0x8] sm:$0xf]
    %v55 = vld [vmem:[%s1 + $0xc] sm:$0xf]
    %v56 = vld [vmem:[%s1 + $0x10] sm:$0xf]
    %v57 = vld [vmem:[%s1 + $0x14] sm:$0xf]
    %v58 = vld [vmem:[%s1 + $0x18] sm:$0xf]
    %v59 = vld [vmem:[%s1 + $0x1c] sm:$0xf]
    %v60 = vld [vmem:[%s1 + $0x20] sm:$0xf]
    %v61 = vld [vmem:[%s1 + $0x24] sm:$0xf]
    %v62 = vld [vmem:[%s1 + $0x28] sm:$0xf]
    %v63 = vld [vmem:[%s1 + $0x2c] sm:$0xf]
    %v64 = vld [vmem:[%s1 + $0x30] sm:$0xf]
    %v65 = vld [vmem:[%s1 + $0x34] sm:$0xf]
    %v66 = vld [vmem:[%s1 + $0x38] sm:$0xf]
    %v67 = vld [vmem:[%s1 + $0x3c] sm:$0xf]
    %v68 = vld [vmem:[%s3] sm:$0x3]
    %v85 = vunpack.c.l.b16 %v52
    %v86 = vunpack.c.l.b16 %v53
    %v87 = vunpack.c.l.b16 %v54
    %v88 = vunpack.c.l.b16 %v55
    %v89 = vunpack.c.l.b16 %v56
    %v90 = vunpack.c.l.b16 %v57
    %v91 = vunpack.c.l.b16 %v58
    %v92 = vunpack.c.l.b16 %v59
    %v93 = vunpack.c.l.b16 %v60
    %v94 = vunpack.c.l.b16 %v61
    %v95 = vunpack.c.l.b16 %v62
    %v96 = vunpack.c.l.b16 %v63
    %v97 = vunpack.c.l.b16 %v64
    %v98 = vunpack.c.l.b16 %v65
    %v99 = vunpack.c.l.b16 %v66
    %v100 = vunpack.c.l.b16 %v67
    %v101 = vpack.c.b16 %v86, %v85
    %v102 = vpack.c.b16 %v88, %v87
    %v103 = vpack.c.b16 %v90, %v89
    %v104 = vpack.c.b16 %v92, %v91
    %v105 = vpack.c.b16 %v94, %v93
    %v106 = vpack.c.b16 %v96, %v95
    %v107 = vpack.c.b16 %v98, %v97
    %v108 = vpack.c.b16 %v100, %v99
    %vm109 = vcmask 31744
    %v111 = vsel %vm109, %v101, 0
    %v114 = vsel %vm109, %v102, 0
    %v117 = vsel %vm109, %v103, 0
    %v120 = vsel %vm109, %v104, 0
    %v123 = vsel %vm109, %v105, 0
    %v126 = vsel %vm109, %v106, 0
    %v129 = vsel %vm109, %v107, 0
    %v132 = vsel %vm109, %v108, 0
    %vm134 = vcmask 1041408
    %v136 = vsel %vm134, %v68, 0
    %138 = vmatprep.subr.bf16.mxu0 0
    %139 = vmatpush1.bf16.msra.mxu0 0
    %140 = vmatprep.subr.bf16.mxu0 0
    %141 = vmatpush1.bf16.msra.mxu0 0
    %142 = vmatprep.subr.bf16.mxu0 0
    %143 = vmatpush1.bf16.msra.mxu0 0
    %144 = vmatprep.subr.bf16.mxu0 0
    %145 = vmatpush1.bf16.msra.mxu0 0
    %146 = vmatprep.subr.bf16.mxu0 0
    %147 = vmatpush1.bf16.msra.mxu0 0
    %148 = vmatprep.subr.bf16.mxu0 0
    %149 = vmatpush1.bf16.msra.mxu0 0
    %150 = vmatprep.subr.bf16.mxu0 0
    %151 = vmatpush1.bf16.msra.mxu0 0
    %152 = vmatprep.subr.bf16.mxu0 0
    %153 = vmatpush1.bf16.msra.mxu0 %v136
    %154 = vmatprep.subr.bf16.mxu0 0
    %155 = vmatpush2.bf16.msra.mxu0 0
    %156 = vmatprep.subr.bf16.mxu0 0
    %157 = vmatpush2.bf16.msra.mxu0 0
    %158 = vmatprep.subr.bf16.mxu0 0
    %159 = vmatpush2.bf16.msra.mxu0 0
    %160 = vmatprep.subr.bf16.mxu0 0
    %161 = vmatpush2.bf16.msra.mxu0 0
    %162 = vmatprep.subr.bf16.mxu0 0
    %163 = vmatpush2.bf16.msra.mxu0 0
    %164 = vmatprep.subr.bf16.mxu0 0
    %165 = vmatpush2.bf16.msra.mxu0 0
    %166 = vmatprep.subr.bf16.mxu0 0
    %167 = vmatpush2.bf16.msra.mxu0 0
    %168 = vmatprep.subr.bf16.mxu0 0
    %169 = vmatpush2.bf16.msra.mxu0 0
    %170 = vmatprep.mubr.bf16.mxu0 0
    %171 = vmatmul.mubr.bf16.gmra.mxu0 %v111
    %v172 = vpop.f32.mrf.mxu0
    %v173 = vadd.f32 0.0, %v172
    %v174 = vpop.f32.mrf.mxu0
    %v175 = vpop.f32.mrf.mxu0
    %v176 = vadd.f32 0.0, %v175
    %v177 = vpop.f32.mrf.mxu0
    %178 = vmatprep.mubr.bf16.mxu0 0
    %179 = vmatmul.mubr.bf16.gmra.mxu0 %v114
    %v180 = vpop.f32.mrf.mxu0
    %v181 = vadd.f32 0.0, %v180
    %v182 = vpop.f32.mrf.mxu0
    %v183 = vpop.f32.mrf.mxu0
    %v184 = vadd.f32 0.0, %v183
    %v185 = vpop.f32.mrf.mxu0
    %186 = vmatprep.mubr.bf16.mxu0 0
    %187 = vmatmul.mubr.bf16.gmra.mxu0 %v117
    %v188 = vpop.f32.mrf.mxu0
    %v189 = vadd.f32 0.0, %v188
    %v190 = vpop.f32.mrf.mxu0
    %v191 = vpop.f32.mrf.mxu0
    %v192 = vadd.f32 0.0, %v191
    %v193 = vpop.f32.mrf.mxu0
    %194 = vmatprep.mubr.bf16.mxu0 0
    %195 = vmatmul.mubr.bf16.gmra.mxu0 %v120
    %v196 = vpop.f32.mrf.mxu0
    %v197 = vadd.f32 0.0, %v196
    %v198 = vpop.f32.mrf.mxu0
    %v199 = vpop.f32.mrf.mxu0
    %v200 = vadd.f32 0.0, %v199
    %v201 = vpop.f32.mrf.mxu0
    %202 = vmatprep.mubr.bf16.mxu0 0
    %203 = vmatmul.mubr.bf16.gmra.mxu0 %v123
    %v204 = vpop.f32.mrf.mxu0
    %v205 = vadd.f32 0.0, %v204
    %v206 = vpop.f32.mrf.mxu0
    %v207 = vpop.f32.mrf.mxu0
    %v208 = vadd.f32 0.0, %v207
    %v209 = vpop.f32.mrf.mxu0
    %210 = vmatprep.mubr.bf16.mxu0 0
    %211 = vmatmul.mubr.bf16.gmra.mxu0 %v126
    %v212 = vpop.f32.mrf.mxu0
    %v213 = vadd.f32 0.0, %v212
    %v214 = vpop.f32.mrf.mxu0
    %v215 = vpop.f32.mrf.mxu0
    %v216 = vadd.f32 0.0, %v215
    %v217 = vpop.f32.mrf.mxu0
    %218 = vmatprep.mubr.bf16.mxu0 0
    %219 = vmatmul.mubr.bf16.gmra.mxu0 %v129
    %v220 = vpop.f32.mrf.mxu0
    %v221 = vadd.f32 0.0, %v220
    %v222 = vpop.f32.mrf.mxu0
    %v223 = vpop.f32.mrf.mxu0
    %v224 = vadd.f32 0.0, %v223
    %v225 = vpop.f32.mrf.mxu0
    %226 = vmatprep.mubr.bf16.mxu0 0
    %227 = vmatmul.mubr.bf16.gmra.mxu0 %v132
    %v228 = vpop.f32.mrf.mxu0
    %v229 = vadd.f32 0.0, %v228
    %v230 = vpop.f32.mrf.mxu0
    %v231 = vpop.f32.mrf.mxu0
    %v232 = vadd.f32 0.0, %v231
    %v233 = vpop.f32.mrf.mxu0
    %234 = vdwg.mxu0
    %v251 = vunpack.c.l.b16 %v35
    %v252 = vunpack.c.l.b16 %v36
    %v253 = vunpack.c.l.b16 %v37
    %v254 = vunpack.c.l.b16 %v38
    %v255 = vunpack.c.l.b16 %v39
    %v256 = vunpack.c.l.b16 %v40
    %v257 = vunpack.c.l.b16 %v41
    %v258 = vunpack.c.l.b16 %v42
    %v259 = vunpack.c.l.b16 %v43
    %v260 = vunpack.c.l.b16 %v44
    %v261 = vunpack.c.l.b16 %v45
    %v262 = vunpack.c.l.b16 %v46
    %v263 = vunpack.c.l.b16 %v47
    %v264 = vunpack.c.l.b16 %v48
    %v265 = vunpack.c.l.b16 %v49
    %v266 = vunpack.c.l.b16 %v50
    %v267 = vpack.c.b16 %v252, %v251
    %v268 = vpack.c.b16 %v254, %v253
    %v269 = vpack.c.b16 %v256, %v255
    %v270 = vpack.c.b16 %v258, %v257
    %v271 = vpack.c.b16 %v260, %v259
    %v272 = vpack.c.b16 %v262, %v261
    %v273 = vpack.c.b16 %v264, %v263
    %v274 = vpack.c.b16 %v266, %v265
    %vm275 = vcmask 64512
    %v277 = vsel %vm275, %v267, 0
    %v280 = vsel %vm275, %v268, 0
    %v283 = vsel %vm275, %v269, 0
    %v286 = vsel %vm275, %v270, 0
    %v289 = vsel %vm275, %v271, 0
    %v292 = vsel %vm275, %v272, 0
    %v295 = vsel %vm275, %v273, 0
    %v298 = vsel %vm275, %v274, 0
    %vm300 = vcmask 1043456
    %v302 = vsel %vm300, %v51, 0
    %304 = vmatprep.subr.bf16.mxu0 0
    %305 = vmatpush1.bf16.msra.mxu0 0
    %306 = vmatprep.subr.bf16.mxu0 0
    %307 = vmatpush1.bf16.msra.mxu0 0
    %308 = vmatprep.subr.bf16.mxu0 0
    %309 = vmatpush1.bf16.msra.mxu0 0
    %310 = vmatprep.subr.bf16.mxu0 0
    %311 = vmatpush1.bf16.msra.mxu0 0
    %312 = vmatprep.subr.bf16.mxu0 0
    %313 = vmatpush1.bf16.msra.mxu0 0
    %314 = vmatprep.subr.bf16.mxu0 0
    %315 = vmatpush1.bf16.msra.mxu0 0
    %316 = vmatprep.subr.bf16.mxu0 0
    %317 = vmatpush1.bf16.msra.mxu0 0
    %318 = vmatprep.subr.bf16.mxu0 0
    %319 = vmatpush1.bf16.msra.mxu0 %v302
    %320 = vmatprep.subr.bf16.mxu0 0
    %321 = vmatpush2.bf16.msra.mxu0 0
    %322 = vmatprep.subr.bf16.mxu0 0
    %323 = vmatpush2.bf16.msra.mxu0 0
    %324 = vmatprep.subr.bf16.mxu0 0
    %325 = vmatpush2.bf16.msra.mxu0 0
    %326 = vmatprep.subr.bf16.mxu0 0
    %327 = vmatpush2.bf16.msra.mxu0 0
    %328 = vmatprep.subr.bf16.mxu0 0
    %329 = vmatpush2.bf16.msra.mxu0 0
    %330 = vmatprep.subr.bf16.mxu0 0
    %331 = vmatpush2.bf16.msra.mxu0 0
    %332 = vmatprep.subr.bf16.mxu0 0
    %333 = vmatpush2.bf16.msra.mxu0 0
    %334 = vmatprep.subr.bf16.mxu0 0
    %335 = vmatpush2.bf16.msra.mxu0 0
    %336 = vmatprep.mubr.bf16.mxu0 0
    %337 = vmatmul.mubr.bf16.gmra.mxu0 %v277
    %v338 = vpop.f32.mrf.mxu0
    %v339 = vadd.f32 %v173, %v338
    %v340 = vpop.f32.mrf.mxu0
    %v341 = vpop.f32.mrf.mxu0
    %v342 = vadd.f32 %v176, %v341
    %v343 = vpop.f32.mrf.mxu0
    %344 = vmatprep.mubr.bf16.mxu0 0
    %345 = vmatmul.mubr.bf16.gmra.mxu0 %v280
    %v346 = vpop.f32.mrf.mxu0
    %v347 = vadd.f32 %v181, %v346
    %v348 = vpop.f32.mrf.mxu0
    %v349 = vpop.f32.mrf.mxu0
    %v350 = vadd.f32 %v184, %v349
    %v351 = vpop.f32.mrf.mxu0
    %352 = vmatprep.mubr.bf16.mxu0 0
    %353 = vmatmul.mubr.bf16.gmra.mxu0 %v283
    %v354 = vpop.f32.mrf.mxu0
    %v355 = vadd.f32 %v189, %v354
    %v356 = vpop.f32.mrf.mxu0
    %v357 = vpop.f32.mrf.mxu0
    %v358 = vadd.f32 %v192, %v357
    %v359 = vpop.f32.mrf.mxu0
    %360 = vmatprep.mubr.bf16.mxu0 0
    %361 = vmatmul.mubr.bf16.gmra.mxu0 %v286
    %v362 = vpop.f32.mrf.mxu0
    %v363 = vadd.f32 %v197, %v362
    %v364 = vpop.f32.mrf.mxu0
    %v365 = vpop.f32.mrf.mxu0
    %v366 = vadd.f32 %v200, %v365
    %v367 = vpop.f32.mrf.mxu0
    %368 = vmatprep.mubr.bf16.mxu0 0
    %369 = vmatmul.mubr.bf16.gmra.mxu0 %v289
    %v370 = vpop.f32.mrf.mxu0
    %v371 = vadd.f32 %v205, %v370
    %v372 = vpop.f32.mrf.mxu0
    %v373 = vpop.f32.mrf.mxu0
    %v374 = vadd.f32 %v208, %v373
    %v375 = vpop.f32.mrf.mxu0
    %376 = vmatprep.mubr.bf16.mxu0 0
    %377 = vmatmul.mubr.bf16.gmra.mxu0 %v292
    %v378 = vpop.f32.mrf.mxu0
    %v379 = vadd.f32 %v213, %v378
    %v380 = vpop.f32.mrf.mxu0
    %v381 = vpop.f32.mrf.mxu0
    %v382 = vadd.f32 %v216, %v381
    %v383 = vpop.f32.mrf.mxu0
    %384 = vmatprep.mubr.bf16.mxu0 0
    %385 = vmatmul.mubr.bf16.gmra.mxu0 %v295
    %v386 = vpop.f32.mrf.mxu0
    %v387 = vadd.f32 %v221, %v386
    %v388 = vpop.f32.mrf.mxu0
    %v389 = vpop.f32.mrf.mxu0
    %v390 = vadd.f32 %v224, %v389
    %v391 = vpop.f32.mrf.mxu0
    %392 = vmatprep.mubr.bf16.mxu0 0
    %393 = vmatmul.mubr.bf16.gmra.mxu0 %v298
    %v394 = vpop.f32.mrf.mxu0
    %v395 = vadd.f32 %v229, %v394
    %v396 = vpop.f32.mrf.mxu0
    %v397 = vpop.f32.mrf.mxu0
    %v398 = vadd.f32 %v232, %v397
    %v399 = vpop.f32.mrf.mxu0
    %400 = vdwg.mxu0
    %v401 = vld [vmem:[%s4] sm:$0x1]
    %v403 = vlaneseq
    %v404 = vshrl.u32 %v403, 7
    %v405 = vsub.s32 0, %v404
    %v406 = vrot.slane %v401, %v405
    %v408 = vadd.f32 %v339, %v406
    %v409 = vadd.f32 %v342, %v406
    %v410 = vadd.f32 %v347, %v406
    %v411 = vadd.f32 %v350, %v406
    %v412 = vadd.f32 %v355, %v406
    %v413 = vadd.f32 %v358, %v406
    %v414 = vadd.f32 %v363, %v406
    %v415 = vadd.f32 %v366, %v406
    %v416 = vadd.f32 %v371, %v406
    %v417 = vadd.f32 %v374, %v406
    %v418 = vadd.f32 %v379, %v406
    %v419 = vadd.f32 %v382, %v406
    %v420 = vadd.f32 %v387, %v406
    %v421 = vadd.f32 %v390, %v406
    %v422 = vadd.f32 %v395, %v406
    %v423 = vadd.f32 %v398, %v406
    %v424 = vmax.f32 %v408, 0.0
    %v425 = vmax.f32 %v409, 0.0
    %v426 = vmax.f32 %v410, 0.0
    %v427 = vmax.f32 %v411, 0.0
    %v428 = vmax.f32 %v412, 0.0
    %v429 = vmax.f32 %v413, 0.0
    %v430 = vmax.f32 %v414, 0.0
    %v431 = vmax.f32 %v415, 0.0
    %v432 = vmax.f32 %v416, 0.0
    %v433 = vmax.f32 %v417, 0.0
    %v434 = vmax.f32 %v418, 0.0
    %v435 = vmax.f32 %v419, 0.0
    %v436 = vmax.f32 %v420, 0.0
    %v437 = vmax.f32 %v421, 0.0
    %v438 = vmax.f32 %v422, 0.0
    %v439 = vmax.f32 %v423, 0.0
    %v440 = vpack.c.bf16 %v425, %v424
    %v441 = vpack.c.bf16 %v427, %v426
    %v442 = vpack.c.bf16 %v429, %v428
    %v443 = vpack.c.bf16 %v431, %v430
    %v444 = vpack.c.bf16 %v433, %v432
    %v445 = vpack.c.bf16 %v435, %v434
    %v446 = vpack.c.bf16 %v437, %v436
    %v447 = vpack.c.bf16 %v439, %v438
    %v448 = vld [vmem:[%s5] sm:$0xf]
    %v449 = vld [vmem:[%s5 + $0x4] sm:$0xf]
    %v450 = vld [vmem:[%s5 + $0x8] sm:$0xf]
    %v451 = vld [vmem:[%s5 + $0xc] sm:$0xf]
    %v452 = vld [vmem:[%s5 + $0x10] sm:$0xf]
    %v453 = vld [vmem:[%s5 + $0x14] sm:$0xf]
    %v454 = vld [vmem:[%s5 + $0x18] sm:$0xf]
    %v455 = vld [vmem:[%s5 + $0x1c] sm:$0xf]
    %v456 = vld [vmem:[%s5 + $0x20] sm:$0xf]
    %v457 = vld [vmem:[%s5 + $0x24] sm:$0xf]
    %v458 = vld [vmem:[%s5 + $0x28] sm:$0xf]
    %v459 = vld [vmem:[%s5 + $0x2c] sm:$0xf]
    %v460 = vld [vmem:[%s5 + $0x30] sm:$0xf]
    %v461 = vld [vmem:[%s5 + $0x34] sm:$0xf]
    %v462 = vld [vmem:[%s5 + $0x38] sm:$0xf]
    %v463 = vld [vmem:[%s5 + $0x3c] sm:$0xf]
    %v464 = vld [vmem:[%s6] sm:$0x1]
    %v466 = vlaneseq
    %v467 = vshrl.u32 %v466, 7
    %v468 = vsub.s32 0, %v467
    %v469 = vrot.slane %v464, %v468
    %v487 = vunpack.c.l.b16 %v448
    %v488 = vunpack.c.l.b16 %v449
    %v489 = vunpack.c.l.b16 %v450
    %v490 = vunpack.c.l.b16 %v451
    %v491 = vunpack.c.l.b16 %v452
    %v492 = vunpack.c.l.b16 %v453
    %v493 = vunpack.c.l.b16 %v454
    %v494 = vunpack.c.l.b16 %v455
    %v495 = vunpack.c.l.b16 %v456
    %v496 = vunpack.c.l.b16 %v457
    %v497 = vunpack.c.l.b16 %v458
    %v498 = vunpack.c.l.b16 %v459
    %v499 = vunpack.c.l.b16 %v460
    %v500 = vunpack.c.l.b16 %v461
    %v501 = vunpack.c.l.b16 %v462
    %v502 = vunpack.c.l.b16 %v463
    %v503 = vpack.c.b16 %v488, %v487
    %v504 = vpack.c.b16 %v490, %v489
    %v505 = vpack.c.b16 %v492, %v491
    %v506 = vpack.c.b16 %v494, %v493
    %v507 = vpack.c.b16 %v496, %v495
    %v508 = vpack.c.b16 %v498, %v497
    %v509 = vpack.c.b16 %v500, %v499
    %v510 = vpack.c.b16 %v502, %v501
    %519 = vmatprep.subr.bf16.mxu0 0
    %520 = vmatpush1.bf16.msra.mxu0 %v510
    %521 = vmatprep.subr.bf16.mxu0 0
    %522 = vmatpush1.bf16.msra.mxu0 %v509
    %523 = vmatprep.subr.bf16.mxu0 0
    %524 = vmatpush1.bf16.msra.mxu0 %v508
    %525 = vmatprep.subr.bf16.mxu0 0
    %526 = vmatpush1.bf16.msra.mxu0 %v507
    %527 = vmatprep.subr.bf16.mxu0 0
    %528 = vmatpush1.bf16.msra.mxu0 %v506
    %529 = vmatprep.subr.bf16.mxu0 0
    %530 = vmatpush1.bf16.msra.mxu0 %v505
    %531 = vmatprep.subr.bf16.mxu0 0
    %532 = vmatpush1.bf16.msra.mxu0 %v504
    %533 = vmatprep.subr.bf16.mxu0 0
    %534 = vmatpush1.bf16.msra.mxu0 %v503
    %535 = vmatprep.subr.bf16.mxu0 0
    %536 = vmatpush2.bf16.msra.mxu0 0
    %537 = vmatprep.subr.bf16.mxu0 0
    %538 = vmatpush2.bf16.msra.mxu0 0
    %539 = vmatprep.subr.bf16.mxu0 0
    %540 = vmatpush2.bf16.msra.mxu0 0
    %541 = vmatprep.subr.bf16.mxu0 0
    %542 = vmatpush2.bf16.msra.mxu0 0
    %543 = vmatprep.subr.bf16.mxu0 0
    %544 = vmatpush2.bf16.msra.mxu0 0
    %545 = vmatprep.subr.bf16.mxu0 0
    %546 = vmatpush2.bf16.msra.mxu0 0
    %547 = vmatprep.subr.bf16.mxu0 0
    %548 = vmatpush2.bf16.msra.mxu0 0
    %549 = vmatprep.subr.bf16.mxu0 0
    %550 = vmatpush2.bf16.msra.mxu0 0
    %551 = vmatprep.mubr.bf16.mxu0 0
    %552 = vmatmul.mubr.bf16.gmra.mxu0 %v440
    %v553 = vpop.f32.mrf.mxu0
    %v554 = vadd.f32 %v469, %v553
    %v555 = vpop.f32.mrf.mxu0
    %v556 = vpop.f32.mrf.mxu0
    %v557 = vadd.f32 %v469, %v556
    %v558 = vpop.f32.mrf.mxu0
    %559 = vmatprep.mubr.bf16.mxu0 0
    %560 = vmatmul.mubr.bf16.gmra.mxu0 %v441
    %v561 = vpop.f32.mrf.mxu0
    %v562 = vadd.f32 %v469, %v561
    %v563 = vpop.f32.mrf.mxu0
    %v564 = vpop.f32.mrf.mxu0
    %v565 = vadd.f32 %v469, %v564
    %v566 = vpop.f32.mrf.mxu0
    %567 = vmatprep.mubr.bf16.mxu0 0
    %568 = vmatmul.mubr.bf16.gmra.mxu0 %v442
    %v569 = vpop.f32.mrf.mxu0
    %v570 = vadd.f32 %v469, %v569
    %v571 = vpop.f32.mrf.mxu0
    %v572 = vpop.f32.mrf.mxu0
    %v573 = vadd.f32 %v469, %v572
    %v574 = vpop.f32.mrf.mxu0
    %575 = vmatprep.mubr.bf16.mxu0 0
    %576 = vmatmul.mubr.bf16.gmra.mxu0 %v443
    %v577 = vpop.f32.mrf.mxu0
    %v578 = vadd.f32 %v469, %v577
    %v579 = vpop.f32.mrf.mxu0
    %v580 = vpop.f32.mrf.mxu0
    %v581 = vadd.f32 %v469, %v580
    %v582 = vpop.f32.mrf.mxu0
    %583 = vmatprep.mubr.bf16.mxu0 0
    %584 = vmatmul.mubr.bf16.gmra.mxu0 %v444
    %v585 = vpop.f32.mrf.mxu0
    %v586 = vadd.f32 %v469, %v585
    %v587 = vpop.f32.mrf.mxu0
    %v588 = vpop.f32.mrf.mxu0
    %v589 = vadd.f32 %v469, %v588
    %v590 = vpop.f32.mrf.mxu0
    %591 = vmatprep.mubr.bf16.mxu0 0
    %592 = vmatmul.mubr.bf16.gmra.mxu0 %v445
    %v593 = vpop.f32.mrf.mxu0
    %v594 = vadd.f32 %v469, %v593
    %v595 = vpop.f32.mrf.mxu0
    %v596 = vpop.f32.mrf.mxu0
    %v597 = vadd.f32 %v469, %v596
    %v598 = vpop.f32.mrf.mxu0
    %599 = vmatprep.mubr.bf16.mxu0 0
    %600 = vmatmul.mubr.bf16.gmra.mxu0 %v446
    %v601 = vpop.f32.mrf.mxu0
    %v602 = vadd.f32 %v469, %v601
    %v603 = vpop.f32.mrf.mxu0
    %v604 = vpop.f32.mrf.mxu0
    %v605 = vadd.f32 %v469, %v604
    %v606 = vpop.f32.mrf.mxu0
    %607 = vmatprep.mubr.bf16.mxu0 0
    %608 = vmatmul.mubr.bf16.gmra.mxu0 %v447
    %v609 = vpop.f32.mrf.mxu0
    %v610 = vadd.f32 %v469, %v609
    %v611 = vpop.f32.mrf.mxu0
    %v612 = vpop.f32.mrf.mxu0
    %v613 = vadd.f32 %v469, %v612
    %v614 = vpop.f32.mrf.mxu0
    %615 = vdwg.mxu0
    %v616 = vmax.f32 %v554, 0.0
    %v617 = vmax.f32 %v557, 0.0
    %v618 = vmax.f32 %v562, 0.0
    %v619 = vmax.f32 %v565, 0.0
    %v620 = vmax.f32 %v570, 0.0
    %v621 = vmax.f32 %v573, 0.0
    %v622 = vmax.f32 %v578, 0.0
    %v623 = vmax.f32 %v581, 0.0
    %v624 = vmax.f32 %v586, 0.0
    %v625 = vmax.f32 %v589, 0.0
    %v626 = vmax.f32 %v594, 0.0
    %v627 = vmax.f32 %v597, 0.0
    %v628 = vmax.f32 %v602, 0.0
    %v629 = vmax.f32 %v605, 0.0
    %v630 = vmax.f32 %v610, 0.0
    %v631 = vmax.f32 %v613, 0.0
    %v632 = vld [vmem:[%s7] sm:$0x1]
    %v634 = vlaneseq
    %v635 = vshrl.u32 %v634, 7
    %v636 = vsub.s32 0, %v635
    %v637 = vrot.slane %v632, %v636
    %v639 = vmul.f32 %v616, %v637
    %v640 = vmul.f32 %v617, %v637
    %v641 = vmul.f32 %v618, %v637
    %v642 = vmul.f32 %v619, %v637
    %v643 = vmul.f32 %v620, %v637
    %v644 = vmul.f32 %v621, %v637
    %v645 = vmul.f32 %v622, %v637
    %v646 = vmul.f32 %v623, %v637
    %v647 = vmul.f32 %v624, %v637
    %v648 = vmul.f32 %v625, %v637
    %v649 = vmul.f32 %v626, %v637
    %v650 = vmul.f32 %v627, %v637
    %v651 = vmul.f32 %v628, %v637
    %v652 = vmul.f32 %v629, %v637
    %v653 = vmul.f32 %v630, %v637
    %v654 = vmul.f32 %v631, %v637
    %655 = vadd.xlane.f32.xlu0 %v639
    %v656 = vpop.xlane.xlu0 %655
    %657 = vadd.xlane.f32.xlu0 %v640
    %v658 = vpop.xlane.xlu0 %657
    %659 = vadd.xlane.f32.xlu0 %v641
    %v660 = vpop.xlane.xlu0 %659
    %661 = vadd.xlane.f32.xlu0 %v642
    %v662 = vpop.xlane.xlu0 %661
    %663 = vadd.xlane.f32.xlu0 %v643
    %v664 = vpop.xlane.xlu0 %663
    %665 = vadd.xlane.f32.xlu0 %v644
    %v666 = vpop.xlane.xlu0 %665
    %667 = vadd.xlane.f32.xlu0 %v645
    %v668 = vpop.xlane.xlu0 %667
    %669 = vadd.xlane.f32.xlu0 %v646
    %v670 = vpop.xlane.xlu0 %669
    %671 = vadd.xlane.f32.xlu0 %v647
    %v672 = vpop.xlane.xlu0 %671
    %673 = vadd.xlane.f32.xlu0 %v648
    %v674 = vpop.xlane.xlu0 %673
    %675 = vadd.xlane.f32.xlu0 %v649
    %v676 = vpop.xlane.xlu0 %675
    %677 = vadd.xlane.f32.xlu0 %v650
    %v678 = vpop.xlane.xlu0 %677
    %679 = vadd.xlane.f32.xlu0 %v651
    %v680 = vpop.xlane.xlu0 %679
    %681 = vadd.xlane.f32.xlu0 %v652
    %v682 = vpop.xlane.xlu0 %681
    %683 = vadd.xlane.f32.xlu0 %v653
    %v684 = vpop.xlane.xlu0 %683
    %685 = vadd.xlane.f32.xlu0 %v654
    %v686 = vpop.xlane.xlu0 %685
    %s687 = sld [smem:[#allocation2]]
    %v688 = vstv %s687
    %v689 = vadd.f32 %v656, %v688
    %v690 = vadd.f32 %v658, %v688
    %v691 = vadd.f32 %v660, %v688
    %v692 = vadd.f32 %v662, %v688
    %v693 = vadd.f32 %v664, %v688
    %v694 = vadd.f32 %v666, %v688
    %v695 = vadd.f32 %v668, %v688
    %v696 = vadd.f32 %v670, %v688
    %v697 = vadd.f32 %v672, %v688
    %v698 = vadd.f32 %v674, %v688
    %v699 = vadd.f32 %v676, %v688
    %v700 = vadd.f32 %v678, %v688
    %v701 = vadd.f32 %v680, %v688
    %v702 = vadd.f32 %v682, %v688
    %v703 = vadd.f32 %v684, %v688
    %v704 = vadd.f32 %v686, %v688
    %v705 = vlaneseq
    %v706 = vshrl.u32 %v705, 7
    %v707 = vadd.s32 %v706, 8
    %v708 = vadd.s32 %v706, 16
    %v709 = vadd.s32 %v706, 24
    %v710 = vadd.s32 %v706, 32
    %v711 = vadd.s32 %v706, 40
    %v712 = vadd.s32 %v706, 48
    %v713 = vadd.s32 %v706, 56
    %v714 = vadd.s32 %v706, 64
    %v715 = vadd.s32 %v706, 72
    %v716 = vadd.s32 %v706, 80
    %v717 = vadd.s32 %v706, 88
    %v718 = vadd.s32 %v706, 96
    %v719 = vadd.s32 %v706, 104
    %v720 = vadd.s32 %v706, 112
    %v721 = vadd.s32 %v706, 120
    %v722 = vlaneseq
    %v723 = vand.u32 %v722, 127
    %vm724 = vcmp.eq.s32.totalorder %v706, %v723
    %vm725 = vcmp.eq.s32.totalorder %v707, %v723
    %vm726 = vcmp.eq.s32.totalorder %v708, %v723
    %vm727 = vcmp.eq.s32.totalorder %v709, %v723
    %vm728 = vcmp.eq.s32.totalorder %v710, %v723
    %vm729 = vcmp.eq.s32.totalorder %v711, %v723
    %vm730 = vcmp.eq.s32.totalorder %v712, %v723
    %vm731 = vcmp.eq.s32.totalorder %v713, %v723
    %vm732 = vcmp.eq.s32.totalorder %v714, %v723
    %vm733 = vcmp.eq.s32.totalorder %v715, %v723
    %vm734 = vcmp.eq.s32.totalorder %v716, %v723
    %vm735 = vcmp.eq.s32.totalorder %v717, %v723
    %vm736 = vcmp.eq.s32.totalorder %v718, %v723
    %vm737 = vcmp.eq.s32.totalorder %v719, %v723
    %vm738 = vcmp.eq.s32.totalorder %v720, %v723
    %vm739 = vcmp.eq.s32.totalorder %v721, %v723
    %v740 = vsel %vm724, %v689, 0.0
    %v741 = vsel %vm725, %v690, 0.0
    %v742 = vsel %vm726, %v691, 0.0
    %v743 = vsel %vm727, %v692, 0.0
    %v744 = vsel %vm728, %v693, 0.0
    %v745 = vsel %vm729, %v694, 0.0
    %v746 = vsel %vm730, %v695, 0.0
    %v747 = vsel %vm731, %v696, 0.0
    %v748 = vsel %vm732, %v697, 0.0
    %v749 = vsel %vm733, %v698, 0.0
    %v750 = vsel %vm734, %v699, 0.0
    %v751 = vsel %vm735, %v700, 0.0
    %v752 = vsel %vm736, %v701, 0.0
    %v753 = vsel %vm737, %v702, 0.0
    %v754 = vsel %vm738, %v703, 0.0
    %v755 = vsel %vm739, %v704, 0.0
    %v756 = vadd.f32 %v740, %v741
    %v757 = vadd.f32 %v756, %v742
    %v758 = vadd.f32 %v757, %v743
    %v759 = vadd.f32 %v758, %v744
    %v760 = vadd.f32 %v759, %v745
    %v761 = vadd.f32 %v760, %v746
    %v762 = vadd.f32 %v761, %v747
    %v763 = vadd.f32 %v762, %v748
    %v764 = vadd.f32 %v763, %v749
    %v765 = vadd.f32 %v764, %v750
    %v766 = vadd.f32 %v765, %v751
    %v767 = vadd.f32 %v766, %v752
    %v768 = vadd.f32 %v767, %v753
    %v769 = vadd.f32 %v768, %v754
    %v770 = vadd.f32 %v769, %v755
    %v771 = vrot.slane %v770, 4
    %v772 = vadd.f32 %v770, %v771
    %v773 = vrot.slane %v772, 2
    %v774 = vadd.f32 %v772, %v773
    %v775 = vrot.slane %v774, 1
    %v776 = vadd.f32 %v774, %v775
    %777 = vst [vmem:[#allocation3] sm:$0x1] %v776
    // Predicated region
    $region38: #{tpu_custom_call.1} parent=1 // pred_check
      _
    $region39: #{tpu_custom_call.1} parent=1 // pred_check_branch
      %779 = sbr.rel (0) target = $region41
    $region40: #{tpu_custom_call.1} parent=1 // pred_region
      %s781 = ssub.s32 16, 16
      %782 = vsyncadd [#allocation4], %s781
      %s784 = sshll.u32 [#allocation3], 4
      %s785 = int_to_ptr.vmem [resolvable:$true] %s784
      %787 = dma.vmem_to_hbm [thread:$0]  %s785, 16, %s9, [#allocation4]
    $region41: #{tpu_custom_call.1} parent=1 // pred_fallthru
      _
    // Predicated region
    $region42: #{tpu_custom_call.1} parent=1 // pred_check
      _
    $region43: #{tpu_custom_call.1} parent=1 // pred_check_branch
      %789 = sbr.rel (0) target = $region45
    $region44: #{tpu_custom_call.1} parent=1 // pred_region
      %790 = dma.done [#allocation4], 16
    $region45: #{tpu_custom_call.1} parent=1 // pred_fallthru
      _
    %791 = vsyncpa [#allocation4], 1

</llo_original>
